<compile_context>
chip_gen: v7x
topology: tpu7x:2x2x1
jax: 0.10.0
libtpu: 0.0.40
codegen_flags: <defaults>
</compile_context>

<pallas_src>
import math

import jax
import jax.numpy as jnp
from jax import lax
from jax.experimental import pallas as pl
from jax.experimental.pallas import tpu as pltpu


def _round_up(x, m):
    return ((x + m - 1) // m) * m


def _cdiv(a, b):
    return (a + b - 1) // b


# ---------------- tiling / VMEM budget ----------------
# Explicit scoped-VMEM limit: above the 16 MiB (v5e) / 32 MiB (v6e, v7x)
# defaults, but safely below v7x's 64 MiB physical VMEM.
_VMEM_LIMIT_BYTES = 48 * 2**20
_VMEM_TILE_BUDGET = _VMEM_LIMIT_BYTES - 8 * 2**20   # headroom for Mosaic scratch
_MAX_TK_BYTES = 16 * 1024          # per-row x bytes per K step (4096 f32 feats)
_MAX_RESIDENT_W_BYTES = 8 * 2**20  # keep W fully VMEM-resident below this
_MIN_ROW_STEPS = 4                 # feed both v7x TCs / give the pipeline work
_MAX_ROW_TILE = 2048

# TODO(synk): tile the class (nb_classes) dim as well if c_pad*tk*itemsize ever
# exceeds the W VMEM budget (only relevant for very large class counts).


def _choose_tiles(n, ft_in, c_pad, in_isz, out_isz, sublane, vmem_budget):
    # K (feature) tiling: bound the per-step K extent so large ft_in does not
    # blow the VMEM budget (critical on v7x's 64 MiB VMEM).
    w_bytes = c_pad * ft_in * in_isz
    if ft_in * in_isz <= _MAX_TK_BYTES and w_bytes <= _MAX_RESIDENT_W_BYTES:
        tk, w_buf = ft_in, 1          # whole W resident, single-buffered
    else:
        tk = min(_MAX_TK_BYTES // in_isz,
                 (_MAX_RESIDENT_W_BYTES // 2) // (c_pad * in_isz))
        tk = max(128, (tk // 128) * 128)
        w_buf = 2                     # W blocks stream over K -> double-buffer
    k_tiles = _cdiv(ft_in, tk)

    # Row (N) tile from the VMEM budget:
    #   x (double-buffered) + out (double-buffered) + f32 accumulator per row,
    #   plus W (w_buf copies) and bias as fixed cost.
    fixed = w_buf * c_pad * tk * in_isz + c_pad * 4
    per_row = 2 * tk * in_isz + 2 * c_pad * out_isz + c_pad * 4
    tn = max(sublane, (vmem_budget - fixed) // per_row)
    tn = min(tn, _MAX_ROW_TILE, _round_up(n, sublane))
    # Give the "parallel" row axis a few steps (megacore sharding on v7x and
    # DMA/compute overlap); mem-bound, so ~512-row tiles are already near the
    # HBM roofline -- shrinking to get >=4 steps costs essentially nothing.
    if n > _MIN_ROW_STEPS * sublane:
        tn = min(tn, _round_up(_cdiv(n, _MIN_ROW_STEPS), sublane))
    tn = max(sublane, (tn // sublane) * sublane)
    return tn, tk, k_tiles


def _block_spec(shape, index_map, *, buffers=None):
    """BlockSpec, optionally with an explicit pipeline buffer count.

    Grid-invariant blocks (fully-resident W, bias) only need one buffer; fall
    back gracefully if this JAX version has no pipeline_mode/Buffered.
    """
    if buffers is not None:
        try:
            return pl.BlockSpec(shape, index_map,
                                pipeline_mode=pl.Buffered(buffers))
        except (TypeError, AttributeError):
            pass
    return pl.BlockSpec(shape, index_map)


def _logreg_kernel(x_ref, w_ref, b_ref, o_ref, acc_ref):
    # x_ref: (TN, TK); w_ref: (C_pad, TK); b_ref: (1, C_pad); o_ref: (TN, C_pad)
    k = pl.program_id(1)

    @pl.when(k == 0)
    def _():
        acc_ref[...] = jnp.zeros_like(acc_ref)

    # Contract the feature dim (dim 1 of BOTH operands) on the MXU with f32
    # accumulation; W stays in its native (nb_classes, ft_in) layout -> no
    # transpose through the XLU.
    acc_ref[...] += lax.dot_general(
        x_ref[...], w_ref[...],
        dimension_numbers=(((1,), (1,)), ((), ())),
        preferred_element_type=jnp.float32,
    )

    @pl.when(k == pl.num_programs(1) - 1)
    def _():
        o_ref[...] = (acc_ref[...] + b_ref[...]).astype(o_ref.dtype)


def logreg_forward(seq, weight, bias, *, compute_dtype=None):
    """seq: (N, ft_in); weight: (nb_classes, ft_in); bias: (nb_classes,).

    Returns seq @ weight.T + bias (nn.Linear forward) via a row/feature-tiled
    Pallas TPU kernel. Set compute_dtype=jnp.bfloat16 to halve x/W HBM traffic
    (f32 accumulation is kept) when model numerics allow.
    """
    n, ft_in = seq.shape
    nb_classes = weight.shape[0]
    out_dtype = seq.dtype

    if compute_dtype is not None:
        seq = seq.astype(compute_dtype)
        weight = weight.astype(compute_dtype)
    in_isz = jnp.dtype(seq.dtype).itemsize
    out_isz = jnp.dtype(out_dtype).itemsize
    sublane = max(8, 32 // in_isz)        # 8 for f32, 16 for bf16, 32 for int8/fp8
    bias2d = bias.astype(jnp.float32).reshape(1, nb_classes)

    # Tiny problems: a one/two-step grid leaves a v7x TensorCore idle and gives
    # the pipeline nothing to overlap -- plain XLA wins there.
    if n < 2 * sublane:
        y = jnp.dot(seq, weight.T, preferred_element_type=jnp.float32) + bias2d
        return y.astype(out_dtype)

    # Lane-dense output: pad the class dim to a multiple of 128 (zero W rows /
    # zero bias -> padded columns are exactly 0 and are sliced off below).
    # No further padding: the kernel is HBM-bound on x, not MXU-width-bound.
    c_pad = _round_up(nb_classes, 128)

    tn, tk, k_tiles = _choose_tiles(n, ft_in, c_pad, in_isz, out_isz, sublane,
                                    _VMEM_TILE_BUDGET)

    # Feature padding only when K-tiling a ft_in that is not a tile multiple
    # (zeros contribute nothing to the contraction). The row (N) dim is NOT
    # padded: the grid uses cdiv(n, tn), garbage rows in the ragged last x tile
    # only feed output rows that are masked on writeback and never stored.
    k_pad = tk * k_tiles
    pad_k = k_pad - ft_in
    pad_c = c_pad - nb_classes
    seq_p = jnp.pad(seq, ((0, 0), (0, pad_k))) if pad_k else seq
    w_p = jnp.pad(weight, ((0, pad_c), (0, pad_k))) if (pad_k or pad_c) else weight
    b_p = jnp.pad(bias2d, ((0, 0), (0, pad_c))) if pad_c else bias2d

    n_tiles = _cdiv(n, tn)
    grid = (n_tiles, k_tiles)

    if k_tiles == 1:
        # Whole W is grid-invariant -> VMEM-resident with a single buffer
        # (halves its footprint vs. default double-buffering).
        w_spec = _block_spec((c_pad, tk), lambda i, k: (0, 0), buffers=1)
    else:
        # W blocks stream along K -> keep default double-buffering.
        w_spec = pl.BlockSpec((c_pad, tk), lambda i, k: (0, k))
    b_spec = _block_spec((1, c_pad), lambda i, k: (0, 0), buffers=1)

    cost = pl.CostEstimate(
        flops=2 * n * k_pad * c_pad,
        transcendentals=0,
        bytes_accessed=(n * k_pad * in_isz + c_pad * k_pad * in_isz
                        + c_pad * 4 + n * c_pad * out_isz),
    )

    out = pl.pallas_call(
        _logreg_kernel,
        out_shape=jax.ShapeDtypeStruct((n, c_pad), out_dtype),
        grid_spec=pltpu.PrefetchScalarGridSpec(
            num_scalar_prefetch=0,
            grid=grid,
            in_specs=[
                pl.BlockSpec((tn, tk), lambda i, k: (i, k)),   # x row/K tile
                w_spec,
                b_spec,
            ],
            out_specs=pl.BlockSpec((tn, c_pad), lambda i, k: (i, 0)),
            scratch_shapes=[pltpu.VMEM((tn, c_pad), jnp.float32)],
        ),
        compiler_params=pltpu.CompilerParams(
            # Row tiles are independent -> shard across TensorCores; the K axis
            # is a reduction into the accumulator -> "arbitrary" and last.
            dimension_semantics=("parallel", "arbitrary"),
            vmem_limit_bytes=_VMEM_LIMIT_BYTES,
        ),
        cost_estimate=cost,
    )(seq_p, w_p, b_p)

    return out[:, :nb_classes] if pad_c else out


def init_logreg_params(key, ft_in, nb_classes, dtype=jnp.float32):
    """Xavier-uniform weight (torch.nn.init.xavier_uniform_), zero bias —
    matching LogReg.weights_init."""
    limit = math.sqrt(6.0 / (ft_in + nb_classes))
    weight = jax.random.uniform(
        key, (nb_classes, ft_in), dtype=dtype, minval=-limit, maxval=limit
    )
    bias = jnp.zeros((nb_classes,), dtype=dtype)
    return weight, bias


if __name__ == "__main__":
    key = jax.random.PRNGKey(0)
    k_x, k_w = jax.random.split(key)

    batch = 300        # not a tile multiple -> exercises the ragged last row tile
    ft_in = 256        # input feature dim
    nb_classes = 10    # output classes (padded to 128 lanes inside the kernel)

    seq = jax.random.normal(k_x, (batch, ft_in), dtype=jnp.float32)
    weight, bias = init_logreg_params(k_w, ft_in, nb_classes)

    out = jax.block_until_ready(logreg_forward(seq, weight, bias))

    # Reference check against plain JAX (same semantics as nn.Linear forward).
    ref = seq @ weight.T + bias
    assert out.shape == (batch, nb_classes)
    assert out.dtype == seq.dtype
    assert jnp.allclose(out, ref, atol=1e-4, rtol=1e-4), float(
        jnp.max(jnp.abs(out - ref))
    )

    print("KERNEL_OK")
</pallas_src>

<mosaic_0001>
module attributes {stable_mosaic.version = 11 : i64} {
  func.func @_logreg_kernel(%arg0: i32, %arg1: i32, %arg2: memref<80x256xf32, #tpu.memory_space<vmem>>, %arg3: memref<128x256xf32, #tpu.memory_space<vmem>>, %arg4: memref<1x128xf32, #tpu.memory_space<vmem>>, %arg5: memref<80x128xf32, #tpu.memory_space<vmem>>, %arg6: memref<80x128xf32, #tpu.memory_space<vmem>>) attributes {dimension_semantics = [#tpu.dimension_semantics<parallel>, #tpu.dimension_semantics<arbitrary>], iteration_bounds = array<i64: 4, 1>, scalar_prefetch = 0 : i64, scratch_operands = 1 : i64, tpu.core_type = #tpu.core_type<tc>, window_params = [{transform_indices = @transform_0, window_bounds = array<i64: 80, 256>}, {pipeline_mode = #tpu.pipeline_mode<synchronous>, transform_indices = @transform_1, window_bounds = array<i64: 128, 256>}, {pipeline_mode = #tpu.pipeline_mode<synchronous>, transform_indices = @transform_2, window_bounds = array<i64: 1, 128>}, {transform_indices = @transform_3, window_bounds = array<i64: 80, 128>}]} {
    %c0_i32 = arith.constant 0 : i32
    %0 = arith.cmpi eq, %arg1, %c0_i32 : i32
    %1 = arith.extui %0 : i1 to i32
    %c0_i32_0 = arith.constant 0 : i32
    %2 = arith.cmpi ne, %1, %c0_i32_0 : i32
    scf.if %2 {
      %cst_10 = arith.constant 0.000000e+00 : f32
      %12 = vector.broadcast %cst_10 : f32 to vector<80x128xf32>
      %c0_11 = arith.constant 0 : index
      %c0_12 = arith.constant 0 : index
      %13 = vector.load %arg6[%c0_11, %c0_12] : memref<80x128xf32, #tpu.memory_space<vmem>>, vector<80x128xf32>
      tpu.vector_store %arg6[%c0_11, %c0_12], %12 {strides = array<i32>} : memref<80x128xf32, #tpu.memory_space<vmem>>, vector<80x128xf32>,
    } else {
    }
    %c0 = arith.constant 0 : index
    %c0_1 = arith.constant 0 : index
    %3 = vector.load %arg6[%c0, %c0_1] : memref<80x128xf32, #tpu.memory_space<vmem>>, vector<80x128xf32>
    %c0_2 = arith.constant 0 : index
    %c0_3 = arith.constant 0 : index
    %4 = vector.load %arg2[%c0_2, %c0_3] : memref<80x256xf32, #tpu.memory_space<vmem>>, vector<80x256xf32>
    %c0_4 = arith.constant 0 : index
    %c0_5 = arith.constant 0 : index
    %5 = vector.load %arg3[%c0_4, %c0_5] : memref<128x256xf32, #tpu.memory_space<vmem>>, vector<128x256xf32>
    %cst = arith.constant dense<0.000000e+00> : vector<80x128xf32>
    %6 = tpu.matmul %4, %5, %cst {dimension_numbers = #tpu.dot_dimension_numbers<[1], [1], [0], [0], [0, 0, 1, 0], [], []>} : vector<80x256xf32>, vector<128x256xf32>, vector<80x128xf32> -> vector<80x128xf32>
    %7 = arith.addf %3, %6 : vector<80x128xf32>
    %c0_6 = arith.constant 0 : index
    %c0_7 = arith.constant 0 : index
    %8 = vector.load %arg6[%c0_6, %c0_7] : memref<80x128xf32, #tpu.memory_space<vmem>>, vector<80x128xf32>
    tpu.vector_store %arg6[%c0_6, %c0_7], %7 {strides = array<i32>} : memref<80x128xf32, #tpu.memory_space<vmem>>, vector<80x128xf32>,
    %c0_i32_8 = arith.constant 0 : i32
    %9 = arith.cmpi eq, %arg1, %c0_i32_8 : i32
    %10 = arith.extui %9 : i1 to i32
    %c0_i32_9 = arith.constant 0 : i32
    %11 = arith.cmpi ne, %10, %c0_i32_9 : i32
    scf.if %11 {
      %c0_10 = arith.constant 0 : index
      %c0_11 = arith.constant 0 : index
      %12 = vector.load %arg6[%c0_10, %c0_11] : memref<80x128xf32, #tpu.memory_space<vmem>>, vector<80x128xf32>
      %c0_12 = arith.constant 0 : index
      %c0_13 = arith.constant 0 : index
      %13 = vector.load %arg4[%c0_12, %c0_13] : memref<1x128xf32, #tpu.memory_space<vmem>>, vector<1x128xf32>
      %14 = vector.broadcast %13 : vector<1x128xf32> to vector<80x128xf32>
      %15 = arith.addf %12, %14 : vector<80x128xf32>
      %c0_14 = arith.constant 0 : index
      %c0_15 = arith.constant 0 : index
      %16 = vector.load %arg5[%c0_14, %c0_15] : memref<80x128xf32, #tpu.memory_space<vmem>>, vector<80x128xf32>
      tpu.vector_store %arg5[%c0_14, %c0_15], %15 {strides = array<i32>} : memref<80x128xf32, #tpu.memory_space<vmem>>, vector<80x128xf32>,
    } else {
    }
    return
  }
  func.func @transform_0(%arg0: i32, %arg1: i32) -> (i32, i32) {
    %c0_i32 = arith.constant 0 : i32
    return %arg0, %arg1 : i32, i32
  }
  func.func @transform_1(%arg0: i32, %arg1: i32) -> (i32, i32) {
    %c0_i32 = arith.constant 0 : i32
    %c0_i32_0 = arith.constant 0 : i32
    %c0_i32_1 = arith.constant 0 : i32
    return %c0_i32, %c0_i32_0 : i32, i32
  }
  func.func @transform_2(%arg0: i32, %arg1: i32) -> (i32, i32) {
    %c0_i32 = arith.constant 0 : i32
    %c0_i32_0 = arith.constant 0 : i32
    %c0_i32_1 = arith.constant 0 : i32
    return %c0_i32, %c0_i32_0 : i32, i32
  }
  func.func @transform_3(%arg0: i32, %arg1: i32) -> (i32, i32) {
    %c0_i32 = arith.constant 0 : i32
    %c0_i32_0 = arith.constant 0 : i32
    return %arg0, %c0_i32 : i32, i32
  }
}

</mosaic_0001>

<llo_original>
// kernel: tpu_custom_call.1
$region0: #{tpu_custom_call.1}
  #allocation0 [shape = 'u32[]', space=smem, size = 0x4, offset = 0x4, fixed_abs, tag = 'smem constant byte address 0x4 - core index']
  #allocation1 [shape = 'u32[144,128]{1,0:T(1,128)}', space=vmem, size = 0x12000, scoped, tag = 'internal scratch']
  #allocation2 [shape = 'f32[80,128]{1,0:T(8,128)}', space=vmem, size = 0xa000, scoped, tag = 'scratch operand']
  %s0 = inlined_call_operand.hbm [shape: f32[300,256], index: 0, kind: input, shape index: {}]
  %s1 = inlined_call_operand.hbm [shape: f32[128,256], index: 1, kind: input, shape index: {}]
  %s2 = inlined_call_operand.vmem [shape: f32[1,128], index: 2, kind: input, shape index: {}]
  %s3 = inlined_call_operand.hbm [shape: f32[300,128], index: 3, kind: output, shape index: {}]
  %s4 = sld [smem:[#allocation0]]
  $region61: #{tpu_custom_call.1} parent=0
    _
  %s6 = ssub.s32 1, %s4
  %s7 = scalar_select 0, %s6, %s4
  $region1: #{tpu_custom_call.1} parent=0
    #allocation3 [shape = 'u8[163840]{0}', space=vmem, size = 0x28000, scoped, tag = 'input window, operand 0']
    #allocation4 [shape = 's32[2]{0}', space=sflag, size = 0x8, scoped, tag = 'scoped memory for tpu_custom_call.1']
    #allocation5 [shape = 's32[2]{0}', space=sflag, size = 0x8, scoped, tag = 'scoped memory for tpu_custom_call.1']
    #allocation6 [shape = 'u8[131072]{0}', space=vmem, size = 0x20000, scoped, tag = 'input window, operand 1, single buffered']
    #allocation7 [shape = 's32[1]{0}', space=sflag, size = 0x4, scoped, tag = 'scoped memory for tpu_custom_call.1']
    #allocation8 [shape = 'u8[81920]{0}', space=vmem, size = 0x14000, scoped, tag = 'output window, operand 0']
    %8 = vsyncpa [#allocation4], 0
    %s9 = scalar_lea.sflag [#allocation4], 1
    %10 = vsyncpa %s9, 0
    %11 = vsyncpa [#allocation7], 0
    %12 = vsyncpa [#allocation5], 0
    %s13 = scalar_lea.sflag [#allocation5], 1
    %14 = vsyncpa %s13, 0
    loop: start=0, step=1, limit=6
    $region2: #{tpu_custom_call.1} parent=1 // loop_pre_header
      _
    $region3: #{tpu_custom_call.1} parent=1 // loop_header
      %s16 = sphi 0, %s20
      %p17 = scmp.ge.s32.totalorder %s16, 6
      %s23 = sphi 0, %s35
      %s24 = sphi 0, %s31
      %s25 = sphi 0, %s23
      %s26 = sphi 0, %s24
      %s27 = sphi 0, %s25
      %s28 = sphi 0, %s26
      %s40 = sphi 0, %s42
      %s43 = sphi 0, %s40
      %s44 = sphi 0, %s43
      %s60 = sphi 0, %s44
      %s64 = sphi 0, %s64
      %s66 = sphi 0, %s64
      %s67 = sphi 0, %s66
      %s81 = sphi 0, %s67
      %s85 = sphi 0, %s85
      %s87 = sphi 0, %s85
      %s88 = sphi 0, %s87
      %s102 = sphi 0, %s88
      %s108 = sphi 0, %s110
      %s111 = sphi 0, %s108
      %s112 = sphi 0, %s111
      %s128 = sphi 0, %s112
    $region4: #{tpu_custom_call.1} parent=1 // loop_header_branch
      %19 = sbr.rel (%p17) target = $region8
    $region5: #{tpu_custom_call.1} parent=1 // loop_body
      %s21 = ssub.s32 %s16, 1
      %s22 = ssub.s32 %s16, 2
      %s29 = sadd.s32 1, %s24
      %p30 = scmp.ge.s32.totalorder %s29, 1
      %s31 = scalar_select %p30, 0, %s29
      %s32 = sadd.s32 1, %s23
      %s33 = scalar_select %p30, %s32, %s23
      %p34 = scmp.ge.s32.totalorder %s33, 4
      %s35 = scalar_select %p34, 0, %s33
      %s36 = ssub.s32 %s23, %s35
      %s37 = ssub.s32 %s24, %s31
      %s38 = sor.u32 %s36, %s37
      %p39 = scmp.eq.s32.totalorder %s38, 0
      %s41 = sadd.s32 %s40, 1
      %s42 = scalar_select %p39, %s40, %s41
      %p45 = pneg %p39
      %p46 = scmp.eq.s32.totalorder %s16, 3
      %p47 = por %p45, %p46
      %p48 = scmp.ne.s32.totalorder %s40, %s43
      %p49 = scmp.eq.s32.totalorder %s16, 0
      %p50 = por %p48, %p49
      %p51 = scmp.ne.s32.totalorder %s40, %s43
      %p52 = scmp.eq.s32.totalorder %s21, 3
      %p53 = por %p51, %p52
      %p54 = scmp.ne.s32.totalorder %s43, %s44
      %p55 = scmp.eq.s32.totalorder %s21, 0
      %p56 = por %p54, %p55
      %p57 = scmp.ne.s32.totalorder %s43, %s44
      %p58 = scmp.eq.s32.totalorder %s22, 3
      %p59 = por %p57, %p58
      %p61 = scmp.ne.s32.totalorder %s44, %s60
      %p62 = scmp.eq.s32.totalorder %s22, 0
      %p63 = por %p61, %p62
      %s65 = sadd.s32 %s64, 1
      %p68 = scmp.eq.s32.totalorder %s16, 3
      %p69 = scmp.ne.s32.totalorder %s64, %s66
      %p70 = scmp.eq.s32.totalorder %s16, 0
      %p71 = por %p69, %p70
      %p72 = scmp.ne.s32.totalorder %s64, %s66
      %p73 = scmp.eq.s32.totalorder %s21, 3
      %p74 = por %p72, %p73
      %p75 = scmp.ne.s32.totalorder %s66, %s67
      %p76 = scmp.eq.s32.totalorder %s21, 0
      %p77 = por %p75, %p76
      %p78 = scmp.ne.s32.totalorder %s66, %s67
      %p79 = scmp.eq.s32.totalorder %s22, 3
      %p80 = por %p78, %p79
      %p82 = scmp.ne.s32.totalorder %s67, %s81
      %p83 = scmp.eq.s32.totalorder %s22, 0
      %p84 = por %p82, %p83
      %s86 = sadd.s32 %s85, 1
      %p89 = scmp.eq.s32.totalorder %s16, 3
      %p90 = scmp.ne.s32.totalorder %s85, %s87
      %p91 = scmp.eq.s32.totalorder %s16, 0
      %p92 = por %p90, %p91
      %p93 = scmp.ne.s32.totalorder %s85, %s87
      %p94 = scmp.eq.s32.totalorder %s21, 3
      %p95 = por %p93, %p94
      %p96 = scmp.ne.s32.totalorder %s87, %s88
      %p97 = scmp.eq.s32.totalorder %s21, 0
      %p98 = por %p96, %p97
      %p99 = scmp.ne.s32.totalorder %s87, %s88
      %p100 = scmp.eq.s32.totalorder %s22, 3
      %p101 = por %p99, %p100
      %p103 = scmp.ne.s32.totalorder %s88, %s102
      %p104 = scmp.eq.s32.totalorder %s22, 0
      %p105 = por %p103, %p104
      %s106 = ssub.s32 %s23, %s35
      %p107 = scmp.eq.s32.totalorder %s106, 0
      %s109 = sadd.s32 %s108, 1
      %s110 = scalar_select %p107, %s108, %s109
      %p113 = pneg %p107
      %p114 = scmp.eq.s32.totalorder %s16, 3
      %p115 = por %p113, %p114
      %p116 = scmp.ne.s32.totalorder %s108, %s111
      %p117 = scmp.eq.s32.totalorder %s16, 0
      %p118 = por %p116, %p117
      %p119 = scmp.ne.s32.totalorder %s108, %s111
      %p120 = scmp.eq.s32.totalorder %s21, 3
      %p121 = por %p119, %p120
      %p122 = scmp.ne.s32.totalorder %s111, %s112
      %p123 = scmp.eq.s32.totalorder %s21, 0
      %p124 = por %p122, %p123
      %p125 = scmp.ne.s32.totalorder %s111, %s112
      %p126 = scmp.eq.s32.totalorder %s22, 3
      %p127 = por %p125, %p126
      %p129 = scmp.ne.s32.totalorder %s112, %s128
      %p130 = scmp.eq.s32.totalorder %s22, 0
      %p131 = por %p129, %p130
      %p132 = scmp.le.s32.totalorder 1, %s16
      %p133 = scmp.lt.s32.totalorder %s16, 5
      %p134 = pnand %p132, %p133
      %p135 = pneg %p134
      // Predicated region
      $region9: #{tpu_custom_call.1} parent=5 // pred_check
        _
      $region10: #{tpu_custom_call.1} parent=5 // pred_check_branch
        %137 = sbr.rel (%p134) target = $region12
      $region11: #{tpu_custom_call.1} parent=5 // pred_region
        %s138 = ssub.s32 %s16, 1
        // Predicated region
        $region13: #{tpu_custom_call.1} parent=11 // pred_check
          %p139 = pneg %p77
        $region14: #{tpu_custom_call.1} parent=11 // pred_check_branch
          %141 = sbr.rel (%p139) target = $region16
        $region15: #{tpu_custom_call.1} parent=11 // pred_region
          %s143 = ssub.s32 4096, 4096
          %144 = vsyncadd [#allocation7], %s143
          %s145 = sshll.u32 [#allocation6], 4
          %s146 = int_to_ptr.vmem [resolvable:$true] %s145
          %151 = dma.hbm_to_vmem [thread:$0]  %s1, 4096, %s146, [#allocation7], 256, 256, 16
        $region16: #{tpu_custom_call.1} parent=11 // pred_fallthru
          _
        // Predicated region
        $region17: #{tpu_custom_call.1} parent=11 // pred_check
          %p152 = pneg %p98
        $region18: #{tpu_custom_call.1} parent=11 // pred_check_branch
          %154 = sbr.rel (%p152) target = $region20
        $region19: #{tpu_custom_call.1} parent=11 // pred_region
          _
        $region20: #{tpu_custom_call.1} parent=11 // pred_fallthru
          _
      $region12: #{tpu_custom_call.1} parent=5 // pred_fallthru
        _
      %p155 = scmp.lt.s32.totalorder %s16, 4
      // Predicated region
      $region21: #{tpu_custom_call.1} parent=5 // pred_check
        %p156 = pneg %p155
      $region22: #{tpu_custom_call.1} parent=5 // pred_check_branch
        %158 = sbr.rel (%p156) target = $region24
      $region23: #{tpu_custom_call.1} parent=5 // pred_region
        // Predicated region
        $region25: #{tpu_custom_call.1} parent=23 // pred_check
          %p159 = pneg %p50
        $region26: #{tpu_custom_call.1} parent=23 // pred_check_branch
          %161 = sbr.rel (%p159) target = $region28
        $region27: #{tpu_custom_call.1} parent=23 // pred_region
          %s162 = sand.u32 %s40, 1
          %s163 = scalar_lea.sflag [#allocation4], %s162
          %s164 = sand.u32 %s40, 1
          %s165 = smul.addr %s164, 160
          %s166 = scalar_lea.vmem [#allocation3], %s165
          %s167 = smul.u32 10, %s23
          %s168 = smul.u32 2, %s24
          %s169 = ssub.s32 38, %s167
          %p170 = scmp.lt.s32.totalorder %s169, 10
          %s171 = scalar_select %p170, %s169, 10
          %s172 = smul.u32 128, %s171
          %s173 = smul.u32 %s172, 2
          %s175 = ssub.s32 2560, %s173
          %176 = vsyncadd %s163, %s175
          %p177 = scmp.ne.s32.totalorder 0, %s173
          %s178 = smul.addr %s167, 2
          %s179 = sadd.s32 %s168, %s178
          %s180 = smul.addr %s179, 128
          %s181 = scalar_lea.hbm %s0, %s180
          %s182 = smul.u32 16, %s171
          %s183 = sshll.u32 %s166, 4
          %s184 = int_to_ptr.vmem [resolvable:$true] %s183
          %s185 = sshll.u32 %s182, 4
          %189 = dma.hbm_to_vmem [thread:$0]  (%p177), %s181, %s185, %s184, %s163, 256, 256, 16
        $region28: #{tpu_custom_call.1} parent=23 // pred_fallthru
          _
      $region24: #{tpu_custom_call.1} parent=5 // pred_fallthru
        _
      %p190 = scmp.le.s32.totalorder 1, %s16
      %p191 = scmp.lt.s32.totalorder %s16, 5
      %p192 = pnand %p190, %p191
      %p193 = pneg %p192
      // Predicated region
      $region29: #{tpu_custom_call.1} parent=5 // pred_check
        _
      $region30: #{tpu_custom_call.1} parent=5 // pred_check_branch
        %195 = sbr.rel (%p192) target = $region32
      $region31: #{tpu_custom_call.1} parent=5 // pred_region
        %s196 = ssub.s32 %s16, 1
        %s197 = sand.u32 %s43, 1
        %s198 = scalar_lea.sflag [#allocation4], %s197
        %s199 = sand.u32 %s43, 1
        %s200 = smul.addr %s199, 160
        %s201 = scalar_lea.vmem [#allocation3], %s200
        // Predicated region
        $region33: #{tpu_custom_call.1} parent=31 // pred_check
          %p202 = pneg %p56
        $region34: #{tpu_custom_call.1} parent=31 // pred_check_branch
          %204 = sbr.rel (%p202) target = $region36
        $region35: #{tpu_custom_call.1} parent=31 // pred_region
          %205 = dma.done %s198, 2560
        $region36: #{tpu_custom_call.1} parent=31 // pred_fallthru
          _
        // Predicated region
        $region37: #{tpu_custom_call.1} parent=31 // pred_check
          %p206 = pneg %p77
        $region38: #{tpu_custom_call.1} parent=31 // pred_check_branch
          %208 = sbr.rel (%p206) target = $region40
        $region39: #{tpu_custom_call.1} parent=31 // pred_region
          %209 = dma.done [#allocation7], 4096
        $region40: #{tpu_custom_call.1} parent=31 // pred_fallthru
          _
        %s210 = sand.u32 %s43, 1
        %s211 = scalar_lea.sflag [#allocation4], %s210
        %s212 = sand.u32 %s43, 1
        %s213 = smul.addr %s212, 160
        %s214 = scalar_lea.vmem [#allocation3], %s213
        %p215 = pneg %p56
        %p216 = pneg %p53
        %p217 = pneg %p77
        %p218 = pneg %p74
        %p219 = pneg %p98
        %p220 = pneg %p95
        %p221 = pneg %p124
        %p222 = pneg %p121
        %s223 = sand.u32 %s111, 1
        %s224 = scalar_lea.sflag [#allocation5], %s223
        %s225 = sand.u32 %s111, 1
        %s226 = smul.addr %s225, 80
        %s227 = scalar_lea.vmem [#allocation8], %s226
        %s228 = smul.u32 10, %s25
        %s229 = smul.u32 2, %s26
        %s230 = ssub.s32 38, %s228
        %p231 = scmp.lt.s32.totalorder %s230, 10
        %s232 = scalar_select %p231, %s230, 10
        %s233 = smul.u32 128, %s232
        %s234 = smul.u32 %s233, 2
        %s235 = smul.u32 10, %s25
        %s236 = ssub.s32 38, %s235
        %p237 = scmp.lt.s32.totalorder %s236, 10
        %s238 = scalar_select %p237, %s236, 10
        %s239 = smul.u32 128, %s238
        %p240 = scmp.eq.s32.totalorder %s26, 0
        // Predicated region
        $region41: #{tpu_custom_call.1} parent=31 // pred_check
          %p241 = pneg %p240
        $region42: #{tpu_custom_call.1} parent=31 // pred_check_branch
          %243 = sbr.rel (%p241) target = $region44
        $region43: #{tpu_custom_call.1} parent=31 // pred_region
          %244 = vst [vmem:[#allocation2] sm:$0xff] 0.0
          %245 = vst [vmem:[#allocation2 + $0x8] sm:$0xff] 0.0
          %246 = vst [vmem:[#allocation2 + $0x10] sm:$0xff] 0.0
          %247 = vst [vmem:[#allocation2 + $0x18] sm:$0xff] 0.0
          %248 = vst [vmem:[#allocation2 + $0x20] sm:$0xff] 0.0
          %249 = vst [vmem:[#allocation2 + $0x28] sm:$0xff] 0.0
          %250 = vst [vmem:[#allocation2 + $0x30] sm:$0xff] 0.0
          %251 = vst [vmem:[#allocation2 + $0x38] sm:$0xff] 0.0
          %252 = vst [vmem:[#allocation2 + $0x40] sm:$0xff] 0.0
          %253 = vst [vmem:[#allocation2 + $0x48] sm:$0xff] 0.0
        $region44: #{tpu_custom_call.1} parent=31 // pred_fallthru
          _
        %v254 = vld [vmem:[#allocation2] sm:$0xff]
        %v255 = vld [vmem:[#allocation2 + $0x8] sm:$0xff]
        %v256 = vld [vmem:[#allocation2 + $0x10] sm:$0xff]
        %v257 = vld [vmem:[#allocation2 + $0x18] sm:$0xff]
        %v258 = vld [vmem:[#allocation2 + $0x20] sm:$0xff]
        %v259 = vld [vmem:[#allocation2 + $0x28] sm:$0xff]
        %v260 = vld [vmem:[#allocation2 + $0x30] sm:$0xff]
        %v261 = vld [vmem:[#allocation2 + $0x38] sm:$0xff]
        %v262 = vld [vmem:[#allocation2 + $0x40] sm:$0xff]
        %v263 = vld [vmem:[#allocation2 + $0x48] sm:$0xff]
        %v264 = vld [vmem:[%s201] sm:$0xff]
        %v265 = vld [vmem:[%s201 + $0x8] sm:$0xff]
        %v266 = vld [vmem:[%s201 + $0x10] sm:$0xff]
        %v267 = vld [vmem:[%s201 + $0x18] sm:$0xff]
        %v268 = vld [vmem:[%s201 + $0x20] sm:$0xff]
        %v269 = vld [vmem:[%s201 + $0x28] sm:$0xff]
        %v270 = vld [vmem:[%s201 + $0x30] sm:$0xff]
        %v271 = vld [vmem:[%s201 + $0x38] sm:$0xff]
        %v272 = vld [vmem:[%s201 + $0x40] sm:$0xff]
        %v273 = vld [vmem:[%s201 + $0x48] sm:$0xff]
        %v274 = vld [vmem:[%s201 + $0x50] sm:$0xff]
        %v275 = vld [vmem:[%s201 + $0x58] sm:$0xff]
        %v276 = vld [vmem:[%s201 + $0x60] sm:$0xff]
        %v277 = vld [vmem:[%s201 + $0x68] sm:$0xff]
        %v278 = vld [vmem:[%s201 + $0x70] sm:$0xff]
        %v279 = vld [vmem:[%s201 + $0x78] sm:$0xff]
        %v280 = vld [vmem:[%s201 + $0x80] sm:$0xff]
        %v281 = vld [vmem:[%s201 + $0x88] sm:$0xff]
        %v282 = vld [vmem:[%s201 + $0x90] sm:$0xff]
        %v283 = vld [vmem:[%s201 + $0x98] sm:$0xff]
        %v284 = vld [vmem:[#allocation6] sm:$0xff]
        %v285 = vld [vmem:[#allocation6 + $0x8] sm:$0xff]
        %v286 = vld [vmem:[#allocation6 + $0x10] sm:$0xff]
        %v287 = vld [vmem:[#allocation6 + $0x18] sm:$0xff]
        %v288 = vld [vmem:[#allocation6 + $0x20] sm:$0xff]
        %v289 = vld [vmem:[#allocation6 + $0x28] sm:$0xff]
        %v290 = vld [vmem:[#allocation6 + $0x30] sm:$0xff]
        %v291 = vld [vmem:[#allocation6 + $0x38] sm:$0xff]
        %v292 = vld [vmem:[#allocation6 + $0x40] sm:$0xff]
        %v293 = vld [vmem:[#allocation6 + $0x48] sm:$0xff]
        %v294 = vld [vmem:[#allocation6 + $0x50] sm:$0xff]
        %v295 = vld [vmem:[#allocation6 + $0x58] sm:$0xff]
        %v296 = vld [vmem:[#allocation6 + $0x60] sm:$0xff]
        %v297 = vld [vmem:[#allocation6 + $0x68] sm:$0xff]
        %v298 = vld [vmem:[#allocation6 + $0x70] sm:$0xff]
        %v299 = vld [vmem:[#allocation6 + $0x78] sm:$0xff]
        %v300 = vld [vmem:[#allocation6 + $0x80] sm:$0xff]
        %v301 = vld [vmem:[#allocation6 + $0x88] sm:$0xff]
        %v302 = vld [vmem:[#allocation6 + $0x90] sm:$0xff]
        %v303 = vld [vmem:[#allocation6 + $0x98] sm:$0xff]
        %v304 = vld [vmem:[#allocation6 + $0xa0] sm:$0xff]
        %v305 = vld [vmem:[#allocation6 + $0xa8] sm:$0xff]
        %v306 = vld [vmem:[#allocation6 + $0xb0] sm:$0xff]
        %v307 = vld [vmem:[#allocation6 + $0xb8] sm:$0xff]
        %v308 = vld [vmem:[#allocation6 + $0xc0] sm:$0xff]
        %v309 = vld [vmem:[#allocation6 + $0xc8] sm:$0xff]
        %v310 = vld [vmem:[#allocation6 + $0xd0] sm:$0xff]
        %v311 = vld [vmem:[#allocation6 + $0xd8] sm:$0xff]
        %v312 = vld [vmem:[#allocation6 + $0xe0] sm:$0xff]
        %v313 = vld [vmem:[#allocation6 + $0xe8] sm:$0xff]
        %v314 = vld [vmem:[#allocation6 + $0xf0] sm:$0xff]
        %v315 = vld [vmem:[#allocation6 + $0xf8] sm:$0xff]
        %316 = vmatprep.subr.mxu0 %v285
        %317 = vmatpush1.xpose.msra.mxu0 %v284
        %318 = vmatprep.subr.mxu0 %v287
        %319 = vmatpush1.xpose.msra.mxu0 %v286
        %320 = vmatprep.subr.mxu0 %v289
        %321 = vmatpush1.xpose.msra.mxu0 %v288
        %322 = vmatprep.subr.mxu0 %v291
        %323 = vmatpush1.xpose.msra.mxu0 %v290
        %324 = vmatprep.subr.mxu0 %v293
        %325 = vmatpush1.xpose.msra.mxu0 %v292
        %326 = vmatprep.subr.mxu0 %v295
        %327 = vmatpush1.xpose.msra.mxu0 %v294
        %328 = vmatprep.subr.mxu0 %v297
        %329 = vmatpush1.xpose.msra.mxu0 %v296
        %330 = vmatprep.subr.mxu0 %v299
        %331 = vmatpush1.xpose.msra.mxu0 %v298
        %332 = vmatprep.subr.mxu0 %v301
        %333 = vmatpush1.xpose.msra.mxu0 %v300
        %334 = vmatprep.subr.mxu0 %v303
        %335 = vmatpush1.xpose.msra.mxu0 %v302
        %336 = vmatprep.subr.mxu0 %v305
        %337 = vmatpush1.xpose.msra.mxu0 %v304
        %338 = vmatprep.subr.mxu0 %v307
        %339 = vmatpush1.xpose.msra.mxu0 %v306
        %340 = vmatprep.subr.mxu0 %v309
        %341 = vmatpush1.xpose.msra.mxu0 %v308
        %342 = vmatprep.subr.mxu0 %v311
        %343 = vmatpush1.xpose.msra.mxu0 %v310
        %344 = vmatprep.subr.mxu0 %v313
        %345 = vmatpush1.xpose.msra.mxu0 %v312
        %346 = vmatprep.subr.mxu0 %v315
        %347 = vmatpush1.xpose.msra.mxu0 %v314
        %348 = vmatprep.subr.mxu0 0.0
        %349 = vmatpush1.xpose.msra.mxu0 0.0
        %350 = vmatprep.subr.mxu0 0.0
        %351 = vmatpush1.xpose.msra.mxu0 0.0
        %352 = vmatprep.subr.mxu0 0.0
        %353 = vmatpush1.xpose.msra.mxu0 0.0
        %354 = vmatprep.subr.mxu0 0.0
        %355 = vmatpush1.xpose.msra.mxu0 0.0
        %356 = vmatprep.subr.mxu0 0.0
        %357 = vmatpush1.xpose.msra.mxu0 0.0
        %358 = vmatprep.subr.mxu0 0.0
        %359 = vmatpush1.xpose.msra.mxu0 0.0
        %360 = vmatprep.subr.mxu0 0.0
        %361 = vmatpush1.xpose.msra.mxu0 0.0
        %362 = vmatprep.subr.mxu0 0.0
        %363 = vmatpush1.xpose.msra.mxu0 0.0
        %364 = vmatprep.subr.mxu0 0.0
        %365 = vmatpush1.xpose.msra.mxu0 0.0
        %366 = vmatprep.subr.mxu0 0.0
        %367 = vmatpush1.xpose.msra.mxu0 0.0
        %368 = vmatprep.subr.mxu0 0.0
        %369 = vmatpush1.xpose.msra.mxu0 0.0
        %370 = vmatprep.subr.mxu0 0.0
        %371 = vmatpush1.xpose.msra.mxu0 0.0
        %372 = vmatprep.subr.mxu0 0.0
        %373 = vmatpush1.xpose.msra.mxu0 0.0
        %374 = vmatprep.subr.mxu0 0.0
        %375 = vmatpush1.xpose.msra.mxu0 0.0
        %376 = vmatprep.subr.mxu0 0.0
        %377 = vmatpush1.xpose.msra.mxu0 0.0
        %378 = vmatprep.subr.mxu0 0.0
        %379 = vmatpush1.xpose.msra.mxu0 0.0
        %380 = vmatprep.mubr.f32.mxu0 %v265
        %381 = vmatmul.mubr.f32.gmra.mrb[0].mxu0 %v264
        %v382 = vpop.f32.mrb[0].mxu0
        %v383 = vadd.f32 0.0, %v382
        %v384 = vpop.f32.mrb[0].mxu0
        %385 = vmatprep.mubr.f32.mxu0 %v267
        %386 = vmatmul.mubr.f32.gmra.mrb[0].mxu0 %v266
        %v387 = vpop.f32.mrb[0].mxu0
        %v388 = vadd.f32 0.0, %v387
        %v389 = vpop.f32.mrb[0].mxu0
        %390 = vmatprep.mubr.f32.mxu0 %v269
        %391 = vmatmul.mubr.f32.gmra.mrb[0].mxu0 %v268
        %v392 = vpop.f32.mrb[0].mxu0
        %v393 = vadd.f32 0.0, %v392
        %v394 = vpop.f32.mrb[0].mxu0
        %395 = vmatprep.mubr.f32.mxu0 %v271
        %396 = vmatmul.mubr.f32.gmra.mrb[0].mxu0 %v270
        %v397 = vpop.f32.mrb[0].mxu0
        %v398 = vadd.f32 0.0, %v397
        %v399 = vpop.f32.mrb[0].mxu0
        %400 = vmatprep.mubr.f32.mxu0 %v273
        %401 = vmatmul.mubr.f32.gmra.mrb[0].mxu0 %v272
        %v402 = vpop.f32.mrb[0].mxu0
        %v403 = vadd.f32 0.0, %v402
        %v404 = vpop.f32.mrb[0].mxu0
        %405 = vmatprep.mubr.f32.mxu0 %v275
        %406 = vmatmul.mubr.f32.gmra.mrb[0].mxu0 %v274
        %v407 = vpop.f32.mrb[0].mxu0
        %v408 = vadd.f32 0.0, %v407
        %v409 = vpop.f32.mrb[0].mxu0
        %410 = vmatprep.mubr.f32.mxu0 %v277
        %411 = vmatmul.mubr.f32.gmra.mrb[0].mxu0 %v276
        %v412 = vpop.f32.mrb[0].mxu0
        %v413 = vadd.f32 0.0, %v412
        %v414 = vpop.f32.mrb[0].mxu0
        %415 = vmatprep.mubr.f32.mxu0 %v279
        %416 = vmatmul.mubr.f32.gmra.mrb[0].mxu0 %v278
        %v417 = vpop.f32.mrb[0].mxu0
        %v418 = vadd.f32 0.0, %v417
        %v419 = vpop.f32.mrb[0].mxu0
        %420 = vmatprep.mubr.f32.mxu0 %v281
        %421 = vmatmul.mubr.f32.gmra.mrb[0].mxu0 %v280
        %v422 = vpop.f32.mrb[0].mxu0
        %v423 = vadd.f32 0.0, %v422
        %v424 = vpop.f32.mrb[0].mxu0
        %425 = vmatprep.mubr.f32.mxu0 %v283
        %426 = vmatmul.mubr.f32.gmra.mrb[0].mxu0 %v282
        %v427 = vpop.f32.mrb[0].mxu0
        %v428 = vadd.f32 0.0, %v427
        %v429 = vpop.f32.mrb[0].mxu0
        %430 = vdwg.mxu0
        %v431 = vadd.f32 %v254, %v383
        %v432 = vadd.f32 %v255, %v388
        %v433 = vadd.f32 %v256, %v393
        %v434 = vadd.f32 %v257, %v398
        %v435 = vadd.f32 %v258, %v403
        %v436 = vadd.f32 %v259, %v408
        %v437 = vadd.f32 %v260, %v413
        %v438 = vadd.f32 %v261, %v418
        %v439 = vadd.f32 %v262, %v423
        %v440 = vadd.f32 %v263, %v428
        %441 = vst [vmem:[#allocation2] sm:$0xff] %v431
        %442 = vst [vmem:[#allocation2 + $0x8] sm:$0xff] %v432
        %443 = vst [vmem:[#allocation2 + $0x10] sm:$0xff] %v433
        %444 = vst [vmem:[#allocation2 + $0x18] sm:$0xff] %v434
        %445 = vst [vmem:[#allocation2 + $0x20] sm:$0xff] %v435
        %446 = vst [vmem:[#allocation2 + $0x28] sm:$0xff] %v436
        %447 = vst [vmem:[#allocation2 + $0x30] sm:$0xff] %v437
        %448 = vst [vmem:[#allocation2 + $0x38] sm:$0xff] %v438
        %449 = vst [vmem:[#allocation2 + $0x40] sm:$0xff] %v439
        %450 = vst [vmem:[#allocation2 + $0x48] sm:$0xff] %v440
        // Predicated region
        $region45: #{tpu_custom_call.1} parent=31 // pred_check
          %p451 = pneg %p240
        $region46: #{tpu_custom_call.1} parent=31 // pred_check_branch
          %453 = sbr.rel (%p451) target = $region48
        $region47: #{tpu_custom_call.1} parent=31 // pred_region
          %v454 = vld [vmem:[#allocation2] sm:$0xff]
          %v455 = vld [vmem:[#allocation2 + $0x8] sm:$0xff]
          %v456 = vld [vmem:[#allocation2 + $0x10] sm:$0xff]
          %v457 = vld [vmem:[#allocation2 + $0x18] sm:$0xff]
          %v458 = vld [vmem:[#allocation2 + $0x20] sm:$0xff]
          %v459 = vld [vmem:[#allocation2 + $0x28] sm:$0xff]
          %v460 = vld [vmem:[#allocation2 + $0x30] sm:$0xff]
          %v461 = vld [vmem:[#allocation2 + $0x38] sm:$0xff]
          %v462 = vld [vmem:[#allocation2 + $0x40] sm:$0xff]
          %v463 = vld [vmem:[#allocation2 + $0x48] sm:$0xff]
          %v464 = vld [vmem:[%s2] sm:$0x1]
          %v466 = vlaneseq
          %v467 = vshrl.u32 %v466, 7
          %v468 = vsub.s32 0, %v467
          %v469 = vrot.slane %v464, %v468
          %v471 = vadd.f32 %v454, %v469
          %v472 = vadd.f32 %v455, %v469
          %v473 = vadd.f32 %v456, %v469
          %v474 = vadd.f32 %v457, %v469
          %v475 = vadd.f32 %v458, %v469
          %v476 = vadd.f32 %v459, %v469
          %v477 = vadd.f32 %v460, %v469
          %v478 = vadd.f32 %v461, %v469
          %v479 = vadd.f32 %v462, %v469
          %v480 = vadd.f32 %v463, %v469
          %481 = vst [vmem:[%s227] sm:$0xff] %v471
          %482 = vst [vmem:[%s227 + $0x8] sm:$0xff] %v472
          %483 = vst [vmem:[%s227 + $0x10] sm:$0xff] %v473
          %484 = vst [vmem:[%s227 + $0x18] sm:$0xff] %v474
          %485 = vst [vmem:[%s227 + $0x20] sm:$0xff] %v475
          %486 = vst [vmem:[%s227 + $0x28] sm:$0xff] %v476
          %487 = vst [vmem:[%s227 + $0x30] sm:$0xff] %v477
          %488 = vst [vmem:[%s227 + $0x38] sm:$0xff] %v478
          %489 = vst [vmem:[%s227 + $0x40] sm:$0xff] %v479
          %490 = vst [vmem:[%s227 + $0x48] sm:$0xff] %v480
        $region48: #{tpu_custom_call.1} parent=31 // pred_fallthru
          _
        %s491 = sand.u32 %s111, 1
        %s492 = scalar_lea.sflag [#allocation5], %s491
        %s493 = sand.u32 %s111, 1
        %s494 = smul.addr %s493, 80
        %s495 = scalar_lea.vmem [#allocation8], %s494
        // Predicated region
        $region49: #{tpu_custom_call.1} parent=31 // pred_check
          %p496 = pneg %p121
        $region50: #{tpu_custom_call.1} parent=31 // pred_check_branch
          %498 = sbr.rel (%p496) target = $region52
        $region51: #{tpu_custom_call.1} parent=31 // pred_region
          %s499 = smul.u32 10, %s25
          %s500 = ssub.s32 38, %s499
          %p501 = scmp.lt.s32.totalorder %s500, 10
          %s502 = scalar_select %p501, %s500, 10
          %s503 = smul.u32 128, %s502
          %s505 = ssub.s32 1280, %s503
          %506 = vsyncadd %s492, %s505
          %p507 = scmp.ne.s32.totalorder 0, %s503
          %s508 = smul.addr %s499, 128
          %s509 = scalar_lea.hbm %s3, %s508
          %s510 = smul.u32 8, %s502
          %s511 = sshll.u32 %s495, 4
          %s512 = int_to_ptr.vmem [resolvable:$true] %s511
          %s513 = sshll.u32 %s510, 4
          %517 = dma.vmem_to_hbm [thread:$0]  (%p507), %s512, %s513, %s509, %s492, 128, 128, 8
        $region52: #{tpu_custom_call.1} parent=31 // pred_fallthru
          _
      $region32: #{tpu_custom_call.1} parent=5 // pred_fallthru
        _
      %p518 = scmp.le.s32.totalorder 2, %s16
      // Predicated region
      $region53: #{tpu_custom_call.1} parent=5 // pred_check
        %p519 = pneg %p518
      $region54: #{tpu_custom_call.1} parent=5 // pred_check_branch
        %521 = sbr.rel (%p519) target = $region56
      $region55: #{tpu_custom_call.1} parent=5 // pred_region
        %s522 = ssub.s32 %s16, 2
        // Predicated region
        $region57: #{tpu_custom_call.1} parent=55 // pred_check
          %p523 = pneg %p127
        $region58: #{tpu_custom_call.1} parent=55 // pred_check_branch
          %525 = sbr.rel (%p523) target = $region60
        $region59: #{tpu_custom_call.1} parent=55 // pred_region
          %s526 = sand.u32 %s112, 1
          %s527 = scalar_lea.sflag [#allocation5], %s526
          %s528 = sand.u32 %s112, 1
          %s529 = smul.addr %s528, 80
          %s530 = scalar_lea.vmem [#allocation8], %s529
          %531 = dma.done %s527, 1280
        $region60: #{tpu_custom_call.1} parent=55 // pred_fallthru
          _
      $region56: #{tpu_custom_call.1} parent=5 // pred_fallthru
        _
    $region6: #{tpu_custom_call.1} parent=1 // loop_footer
      %s20 = sadd.s32 1, %s16
    $region7: #{tpu_custom_call.1} parent=1 // loop_footer_branch
      %15 = sbr.rel target = $region3
    $region8: #{tpu_custom_call.1} parent=1 // loop_exit
      _
    %532 = vsyncpa [#allocation4], 1
    %s533 = scalar_lea.sflag [#allocation4], 1
    %534 = vsyncpa %s533, 1
    %535 = vsyncpa [#allocation7], 1
    %536 = vsyncpa [#allocation5], 1
    %s537 = scalar_lea.sflag [#allocation5], 1
    %538 = vsyncpa %s537, 1

</llo_original>
